<compile_context>
chip_gen: v5e
topology: v5e:2x2
jax: 0.10.0
libtpu: 0.0.40
codegen_flags: <defaults>
</compile_context>

<pallas_src>
import functools
import math

import jax
import jax.numpy as jnp
from jax.experimental import pallas as pl
from jax.experimental.pallas import tpu as pltpu


def _apply_activation(y, activation):
    if activation is None or activation == "Identity":
        return y
    if activation == "ReLU":
        return jnp.maximum(y, 0.0)
    if activation == "Sigmoid":
        return jax.nn.sigmoid(y)
    if activation == "Tanh":
        return jnp.tanh(y)
    if activation == "LeakyReLU":
        return jnp.where(y > 0, y, 0.01 * y)
    if activation == "GELU":
        # torch.nn.GELU default is the exact erf form.
        return jax.nn.gelu(y, approximate=False)
    if activation == "SiLU":
        return jax.nn.silu(y)
    if activation == "Softplus":
        return jax.nn.softplus(y)
    if activation == "ELU":
        return jnp.where(y > 0, y, jnp.expm1(y))
    # TODO(synk): other torch.nn activations not mapped; add as needed.
    raise ValueError(f"unsupported activation: {activation}")


def _output_conv_kernel(x_ref, w_ref, b_ref, o_ref, *, c_in, c_out, activation):
    # x_ref: (C_in,  S_sub, 128) VMEM tile  (batch dim squeezed by BlockSpec)
    # w_ref: (C_out*C_in,) SMEM f32 scalars, row-major over (co, ci)
    # b_ref: (C_out,)      SMEM f32 scalars
    # o_ref: (C_out, S_sub, 128) VMEM tile
    for co in range(c_out):
        acc = x_ref[0].astype(jnp.float32) * w_ref[co * c_in + 0]
        for ci in range(1, c_in):
            acc = acc + x_ref[ci].astype(jnp.float32) * w_ref[co * c_in + ci]
        acc = acc + b_ref[co]
        # Per-channel slab store: lane-dense, unmasked, no concatenate/relayout.
        o_ref[co] = _apply_activation(acc, activation).astype(o_ref.dtype)


def _vmem_capacity_bytes():
    try:
        info = pltpu.get_tpu_info()
        cap = getattr(info, "vmem_capacity_bytes", None)
        if cap:
            return int(cap)
    except Exception:
        pass
    return 128 * 1024 * 1024  # v5e/v6e default


def output_conv(x_nchw, weight, bias, activation=None):
    """Forward pass of OutputConv (1x1 conv + optional activation).

    x_nchw : (N, C_in, H, W)
    weight : (C_out, C_in, 1, 1)  (PyTorch Conv2d layout for kernel_size=1)
    bias   : (C_out,)
    """
    N, C_in, H, W = x_nchw.shape
    C_out = weight.shape[0]
    HW = H * W
    dtype = x_nchw.dtype
    itemsize = jnp.dtype(dtype).itemsize

    # --- Host-side views / one-time pad (no in-kernel reshapes). -----------
    HW_pad = ((HW + 127) // 128) * 128
    x3 = x_nchw.reshape(N, C_in, HW)
    if HW_pad != HW:
        x3 = jnp.pad(x3, ((0, 0), (0, 0), (0, HW_pad - HW)))
    S = HW_pad // 128
    x4 = x3.reshape(N, C_in, S, 128)

    # Weights/bias as 32-bit SMEM scalars (cast host-side; f32 accumulation).
    w_flat = weight.reshape(C_out * C_in).astype(jnp.float32)
    b_flat = bias.reshape(C_out).astype(jnp.float32)

    # --- Tile sizing against the per-generation VMEM budget. ---------------
    vmem_cap = _vmem_capacity_bytes()
    # 64 MiB scoped limit on v5e/v6e (128 MiB phys), 32 MiB on v7x (64 MiB phys).
    vmem_limit = min(vmem_cap // 2, 96 * 1024 * 1024)
    tile_budget = (vmem_limit * 3) // 4          # leave compiler headroom
    bytes_per_subrow = (C_in + C_out) * 128 * itemsize
    max_sub = max(1, tile_budget // (2 * bytes_per_subrow))   # double-buffered
    s_sub = min(S, 2048, int(max_sub))           # 2048*128 f32 cols ~ multi-MiB/step
    if s_sub < S:
        s_sub = max(8, (s_sub // 8) * 8)         # (8,128) sublane alignment
        s_sub = min(s_sub, S)
    n_s = pl.cdiv(S, s_sub)

    # Keep >= 2 grid steps when possible so both v7x TensorCores get work.
    # (One extra ~0.35us step is negligible on single-TC v5e/v6e.)
    if N * n_s < 2 and S >= 16:
        half = (((S + 1) // 2) + 7) // 8 * 8
        if 0 < half < S:
            s_sub = half
            n_s = pl.cdiv(S, s_sub)

    kernel = functools.partial(
        _output_conv_kernel, c_in=C_in, c_out=C_out, activation=activation)

    out4 = pl.pallas_call(
        kernel,
        out_shape=jax.ShapeDtypeStruct((N, C_out, S, 128), dtype),
        grid_spec=pltpu.PrefetchScalarGridSpec(
            num_scalar_prefetch=0,
            grid=(N, n_s),
            in_specs=[
                pl.BlockSpec((None, C_in, s_sub, 128), lambda n, s: (n, 0, s, 0)),
                pl.BlockSpec(memory_space=pltpu.MemorySpace.SMEM),  # weights
                pl.BlockSpec(memory_space=pltpu.MemorySpace.SMEM),  # bias
            ],
            out_specs=pl.BlockSpec((None, C_out, s_sub, 128),
                                   lambda n, s: (n, 0, s, 0)),
        ),
        compiler_params=pltpu.CompilerParams(
            dimension_semantics=("parallel", "parallel"),
            vmem_limit_bytes=int(vmem_limit),
        ),
    )(x4, w_flat, b_flat)

    out = out4.reshape(N, C_out, HW_pad)
    if HW_pad != HW:
        out = out[:, :, :HW]
    return out.reshape(N, C_out, H, W)


if __name__ == "__main__":
    key = jax.random.PRNGKey(0)
    k_x, k_w, k_b, k_x2 = jax.random.split(key, 4)

    # Small shapes consistent with the module: batch=2, in_channels=4,
    # out_channels=2, spatial=16x16.
    N, C_in, C_out, Hh, Ww = 2, 4, 2, 16, 16

    x = jax.random.normal(k_x, (N, C_in, Hh, Ww), dtype=jnp.float32)

    # Deterministic parameter init mimicking PyTorch Conv2d defaults
    # (uniform in +/- 1/sqrt(fan_in), fan_in = C_in * 1 * 1).
    bound = 1.0 / math.sqrt(C_in)
    weight = jax.random.uniform(k_w, (C_out, C_in, 1, 1),
                                minval=-bound, maxval=bound, dtype=jnp.float32)
    bias = jax.random.uniform(k_b, (C_out,),
                              minval=-bound, maxval=bound, dtype=jnp.float32)
    w2d = weight.reshape(C_out, C_in)

    # Activation path (e.g. Sigmoid).
    out = jax.block_until_ready(output_conv(x, weight, bias, activation="Sigmoid"))
    ref = jax.nn.sigmoid(jnp.einsum("nchw,oc->nohw", x, w2d)
                         + bias[None, :, None, None])
    assert out.shape == (N, C_out, Hh, Ww)
    assert jnp.allclose(out, ref, atol=1e-5, rtol=1e-5)

    # activation=None path.
    out_none = jax.block_until_ready(output_conv(x, weight, bias, activation=None))
    ref_none = jnp.einsum("nchw,oc->nohw", x, w2d) + bias[None, :, None, None]
    assert jnp.allclose(out_none, ref_none, atol=1e-5, rtol=1e-5)

    # Ragged spatial (H*W not a multiple of 128) exercises the host-side pad.
    x2 = jax.random.normal(k_x2, (1, C_in, 13, 13), dtype=jnp.float32)
    out2 = jax.block_until_ready(output_conv(x2, weight, bias, activation="ReLU"))
    ref2 = jnp.maximum(jnp.einsum("nchw,oc->nohw", x2, w2d)
                       + bias[None, :, None, None], 0.0)
    assert out2.shape == (1, C_out, 13, 13)
    assert jnp.allclose(out2, ref2, atol=1e-5, rtol=1e-5)

    print("KERNEL_OK")
</pallas_src>

<mosaic_0001>
module attributes {stable_mosaic.version = 11 : i64} {
  func.func @_output_conv_kernel(%arg0: i32, %arg1: i32, %arg2: memref<1x4x2x128xf32, #tpu.memory_space<vmem>>, %arg3: memref<8xf32, #tpu.memory_space<smem>>, %arg4: memref<2xf32, #tpu.memory_space<smem>>, %arg5: memref<1x2x2x128xf32, #tpu.memory_space<vmem>>) attributes {dimension_semantics = [#tpu.dimension_semantics<parallel>, #tpu.dimension_semantics<parallel>], iteration_bounds = array<i64: 2, 1>, scalar_prefetch = 0 : i64, scratch_operands = 0 : i64, tpu.core_type = #tpu.core_type<tc>, window_params = [{transform_indices = @transform_0, window_bounds = array<i64: 1, 4, 2, 128>}, {transform_indices = @transform_1, window_bounds = array<i64: 8>}, {transform_indices = @transform_2, window_bounds = array<i64: 2>}, {transform_indices = @transform_3, window_bounds = array<i64: 1, 2, 2, 128>}]} {
    %c0 = arith.constant 0 : index
    %c0_0 = arith.constant 0 : index
    %c0_1 = arith.constant 0 : index
    %c0_2 = arith.constant 0 : index
    %0 = vector.load %arg2[%c0, %c0_0, %c0_1, %c0_2] : memref<1x4x2x128xf32, #tpu.memory_space<vmem>>, vector<1x1x2x128xf32>
    %1 = vector.shape_cast %0 : vector<1x1x2x128xf32> to vector<2x128xf32>
    %c0_3 = arith.constant 0 : index
    %2 = memref.load %arg3[%c0_3] : memref<8xf32, #tpu.memory_space<smem>>
    %3 = vector.broadcast %2 : f32 to vector<2x128xf32>
    %4 = arith.mulf %1, %3 : vector<2x128xf32>
    %c0_4 = arith.constant 0 : index
    %c1 = arith.constant 1 : index
    %c0_5 = arith.constant 0 : index
    %c0_6 = arith.constant 0 : index
    %5 = vector.load %arg2[%c0_4, %c1, %c0_5, %c0_6] : memref<1x4x2x128xf32, #tpu.memory_space<vmem>>, vector<1x1x2x128xf32>
    %6 = vector.shape_cast %5 : vector<1x1x2x128xf32> to vector<2x128xf32>
    %c1_7 = arith.constant 1 : index
    %7 = memref.load %arg3[%c1_7] : memref<8xf32, #tpu.memory_space<smem>>
    %8 = vector.broadcast %7 : f32 to vector<2x128xf32>
    %9 = arith.mulf %6, %8 : vector<2x128xf32>
    %10 = arith.addf %4, %9 : vector<2x128xf32>
    %c0_8 = arith.constant 0 : index
    %c2 = arith.constant 2 : index
    %c0_9 = arith.constant 0 : index
    %c0_10 = arith.constant 0 : index
    %11 = vector.load %arg2[%c0_8, %c2, %c0_9, %c0_10] : memref<1x4x2x128xf32, #tpu.memory_space<vmem>>, vector<1x1x2x128xf32>
    %12 = vector.shape_cast %11 : vector<1x1x2x128xf32> to vector<2x128xf32>
    %c2_11 = arith.constant 2 : index
    %13 = memref.load %arg3[%c2_11] : memref<8xf32, #tpu.memory_space<smem>>
    %14 = vector.broadcast %13 : f32 to vector<2x128xf32>
    %15 = arith.mulf %12, %14 : vector<2x128xf32>
    %16 = arith.addf %10, %15 : vector<2x128xf32>
    %c0_12 = arith.constant 0 : index
    %c3 = arith.constant 3 : index
    %c0_13 = arith.constant 0 : index
    %c0_14 = arith.constant 0 : index
    %17 = vector.load %arg2[%c0_12, %c3, %c0_13, %c0_14] : memref<1x4x2x128xf32, #tpu.memory_space<vmem>>, vector<1x1x2x128xf32>
    %18 = vector.shape_cast %17 : vector<1x1x2x128xf32> to vector<2x128xf32>
    %c3_15 = arith.constant 3 : index
    %19 = memref.load %arg3[%c3_15] : memref<8xf32, #tpu.memory_space<smem>>
    %20 = vector.broadcast %19 : f32 to vector<2x128xf32>
    %21 = arith.mulf %18, %20 : vector<2x128xf32>
    %22 = arith.addf %16, %21 : vector<2x128xf32>
    %c0_16 = arith.constant 0 : index
    %23 = memref.load %arg4[%c0_16] : memref<2xf32, #tpu.memory_space<smem>>
    %24 = vector.broadcast %23 : f32 to vector<2x128xf32>
    %25 = arith.addf %22, %24 : vector<2x128xf32>
    %26 = arith.negf %25 : vector<2x128xf32>
    %27 = math.exp %26 : vector<2x128xf32>
    %cst = arith.constant 1.000000e+00 : f32
    %28 = vector.broadcast %cst : f32 to vector<2x128xf32>
    %29 = arith.addf %28, %27 : vector<2x128xf32>
    %30 = arith.divf %28, %29 : vector<2x128xf32>
    %c0_17 = arith.constant 0 : index
    %c0_18 = arith.constant 0 : index
    %c0_19 = arith.constant 0 : index
    %c0_20 = arith.constant 0 : index
    %31 = vector.load %arg5[%c0_17, %c0_18, %c0_19, %c0_20] : memref<1x2x2x128xf32, #tpu.memory_space<vmem>>, vector<1x1x2x128xf32>
    %32 = vector.shape_cast %31 : vector<1x1x2x128xf32> to vector<2x128xf32>
    %33 = vector.shape_cast %30 : vector<2x128xf32> to vector<1x1x2x128xf32>
    tpu.vector_store %arg5[%c0_17, %c0_18, %c0_19, %c0_20], %33 {strides = array<i32>} : memref<1x2x2x128xf32, #tpu.memory_space<vmem>>, vector<1x1x2x128xf32>,
    %c0_21 = arith.constant 0 : index
    %c0_22 = arith.constant 0 : index
    %c0_23 = arith.constant 0 : index
    %c0_24 = arith.constant 0 : index
    %34 = vector.load %arg2[%c0_21, %c0_22, %c0_23, %c0_24] : memref<1x4x2x128xf32, #tpu.memory_space<vmem>>, vector<1x1x2x128xf32>
    %35 = vector.shape_cast %34 : vector<1x1x2x128xf32> to vector<2x128xf32>
    %c4 = arith.constant 4 : index
    %36 = memref.load %arg3[%c4] : memref<8xf32, #tpu.memory_space<smem>>
    %37 = vector.broadcast %36 : f32 to vector<2x128xf32>
    %38 = arith.mulf %35, %37 : vector<2x128xf32>
    %c0_25 = arith.constant 0 : index
    %c1_26 = arith.constant 1 : index
    %c0_27 = arith.constant 0 : index
    %c0_28 = arith.constant 0 : index
    %39 = vector.load %arg2[%c0_25, %c1_26, %c0_27, %c0_28] : memref<1x4x2x128xf32, #tpu.memory_space<vmem>>, vector<1x1x2x128xf32>
    %40 = vector.shape_cast %39 : vector<1x1x2x128xf32> to vector<2x128xf32>
    %c5 = arith.constant 5 : index
    %41 = memref.load %arg3[%c5] : memref<8xf32, #tpu.memory_space<smem>>
    %42 = vector.broadcast %41 : f32 to vector<2x128xf32>
    %43 = arith.mulf %40, %42 : vector<2x128xf32>
    %44 = arith.addf %38, %43 : vector<2x128xf32>
    %c0_29 = arith.constant 0 : index
    %c2_30 = arith.constant 2 : index
    %c0_31 = arith.constant 0 : index
    %c0_32 = arith.constant 0 : index
    %45 = vector.load %arg2[%c0_29, %c2_30, %c0_31, %c0_32] : memref<1x4x2x128xf32, #tpu.memory_space<vmem>>, vector<1x1x2x128xf32>
    %46 = vector.shape_cast %45 : vector<1x1x2x128xf32> to vector<2x128xf32>
    %c6 = arith.constant 6 : index
    %47 = memref.load %arg3[%c6] : memref<8xf32, #tpu.memory_space<smem>>
    %48 = vector.broadcast %47 : f32 to vector<2x128xf32>
    %49 = arith.mulf %46, %48 : vector<2x128xf32>
    %50 = arith.addf %44, %49 : vector<2x128xf32>
    %c0_33 = arith.constant 0 : index
    %c3_34 = arith.constant 3 : index
    %c0_35 = arith.constant 0 : index
    %c0_36 = arith.constant 0 : index
    %51 = vector.load %arg2[%c0_33, %c3_34, %c0_35, %c0_36] : memref<1x4x2x128xf32, #tpu.memory_space<vmem>>, vector<1x1x2x128xf32>
    %52 = vector.shape_cast %51 : vector<1x1x2x128xf32> to vector<2x128xf32>
    %c7 = arith.constant 7 : index
    %53 = memref.load %arg3[%c7] : memref<8xf32, #tpu.memory_space<smem>>
    %54 = vector.broadcast %53 : f32 to vector<2x128xf32>
    %55 = arith.mulf %52, %54 : vector<2x128xf32>
    %56 = arith.addf %50, %55 : vector<2x128xf32>
    %c1_37 = arith.constant 1 : index
    %57 = memref.load %arg4[%c1_37] : memref<2xf32, #tpu.memory_space<smem>>
    %58 = vector.broadcast %57 : f32 to vector<2x128xf32>
    %59 = arith.addf %56, %58 : vector<2x128xf32>
    %60 = arith.negf %59 : vector<2x128xf32>
    %61 = math.exp %60 : vector<2x128xf32>
    %cst_38 = arith.constant 1.000000e+00 : f32
    %62 = vector.broadcast %cst_38 : f32 to vector<2x128xf32>
    %63 = arith.addf %62, %61 : vector<2x128xf32>
    %64 = arith.divf %62, %63 : vector<2x128xf32>
    %c0_39 = arith.constant 0 : index
    %c1_40 = arith.constant 1 : index
    %c0_41 = arith.constant 0 : index
    %c0_42 = arith.constant 0 : index
    %65 = vector.load %arg5[%c0_39, %c1_40, %c0_41, %c0_42] : memref<1x2x2x128xf32, #tpu.memory_space<vmem>>, vector<1x1x2x128xf32>
    %66 = vector.shape_cast %65 : vector<1x1x2x128xf32> to vector<2x128xf32>
    %67 = vector.shape_cast %64 : vector<2x128xf32> to vector<1x1x2x128xf32>
    tpu.vector_store %arg5[%c0_39, %c1_40, %c0_41, %c0_42], %67 {strides = array<i32>} : memref<1x2x2x128xf32, #tpu.memory_space<vmem>>, vector<1x1x2x128xf32>,
    return
  }
  func.func @transform_0(%arg0: i32, %arg1: i32) -> (i32, i32, i32, i32) {
    %c0_i32 = arith.constant 0 : i32
    %c0_i32_0 = arith.constant 0 : i32
    %c0_i32_1 = arith.constant 0 : i32
    return %arg0, %c0_i32, %arg1, %c0_i32_0 : i32, i32, i32, i32
  }
  func.func @transform_1(%arg0: i32, %arg1: i32) -> i32 {
    %c0_i32 = arith.constant 0 : i32
    %c0_i32_0 = arith.constant 0 : i32
    return %c0_i32 : i32
  }
  func.func @transform_2(%arg0: i32, %arg1: i32) -> i32 {
    %c0_i32 = arith.constant 0 : i32
    %c0_i32_0 = arith.constant 0 : i32
    return %c0_i32 : i32
  }
  func.func @transform_3(%arg0: i32, %arg1: i32) -> (i32, i32, i32, i32) {
    %c0_i32 = arith.constant 0 : i32
    %c0_i32_0 = arith.constant 0 : i32
    %c0_i32_1 = arith.constant 0 : i32
    return %arg0, %c0_i32, %arg1, %c0_i32_0 : i32, i32, i32, i32
  }
}

</mosaic_0001>

<llo_original>
// kernel: tpu_custom_call.1
$region0: #{tpu_custom_call.1}
  #allocation0 [shape = 'u32[]', space=smem, size = 0x4, offset = 0x4, fixed_abs, tag = 'smem constant byte address 0x4 - core index']
  #allocation1 [shape = 'u32[72,128]{1,0:T(1,128)}', space=vmem, size = 0x9000, scoped, tag = 'internal scratch']
  %s0 = inlined_call_operand.hbm [shape: f32[2,4,2,128], index: 0, kind: input, shape index: {}]
  %s1 = inlined_call_operand.hbm [shape: f32[8], index: 1, kind: input, shape index: {}]
  %s2 = inlined_call_operand.vmem [shape: f32[2], index: 2, kind: input, shape index: {}]
  %s3 = inlined_call_operand.hbm [shape: f32[2,2,2,128], index: 3, kind: output, shape index: {}]
  %s4 = sld [smem:[#allocation0]]
  $region57: #{tpu_custom_call.1} parent=0
    _
  %s6 = ssub.s32 1, %s4
  %s7 = scalar_select 0, %s6, %s4
  $region1: #{tpu_custom_call.1} parent=0
    #allocation2 [shape = 'u8[8192]{0}', space=vmem, size = 0x2000, scoped, tag = 'input window, operand 0']
    #allocation3 [shape = 's32[2]{0}', space=sflag, size = 0x8, scoped, tag = 'scoped memory for tpu_custom_call.1']
    #allocation4 [shape = 's32[2]{0}', space=sflag, size = 0x8, scoped, tag = 'scoped memory for tpu_custom_call.1']
    #allocation5 [shape = 's32[2]{0}', space=sflag, size = 0x8, scoped, tag = 'scoped memory for tpu_custom_call.1']
    #allocation6 [shape = 's32[2]{0}', space=sflag, size = 0x8, scoped, tag = 'scoped memory for tpu_custom_call.1']
    #allocation7 [shape = 'u8[512]{0}', space=smem, size = 0x200, scoped, tag = 'input window, operand 1, single buffered']
    #allocation8 [shape = 'u8[512]{0}', space=smem, size = 0x200, scoped, tag = 'input window, operand 2, single buffered']
    #allocation9 [shape = 'u8[4096]{0}', space=vmem, size = 0x1000, scoped, tag = 'output window, operand 0']
    %8 = vsyncpa [#allocation3], 0
    %s9 = scalar_lea.sflag [#allocation3], 1
    %10 = vsyncpa %s9, 0
    %11 = vsyncpa [#allocation5], 0
    %12 = vsyncpa [#allocation6], 0
    %13 = vsyncpa [#allocation4], 0
    %s14 = scalar_lea.sflag [#allocation4], 1
    %15 = vsyncpa %s14, 0
    loop: start=0, step=1, limit=4
    $region2: #{tpu_custom_call.1} parent=1 // loop_pre_header
      _
    $region3: #{tpu_custom_call.1} parent=1 // loop_header
      %s17 = sphi 0, %s21
      %p18 = scmp.ge.s32.totalorder %s17, 4
      %s24 = sphi 0, %s36
      %s25 = sphi 0, %s32
      %s26 = sphi 0, %s24
      %s27 = sphi 0, %s25
      %s28 = sphi 0, %s26
      %s29 = sphi 0, %s27
      %s41 = sphi 0, %s43
      %s44 = sphi 0, %s41
      %s45 = sphi 0, %s44
      %s61 = sphi 0, %s45
      %s65 = sphi 0, %s65
      %s67 = sphi 0, %s65
      %s68 = sphi 0, %s67
      %s82 = sphi 0, %s68
      %s86 = sphi 0, %s86
      %s88 = sphi 0, %s86
      %s89 = sphi 0, %s88
      %s103 = sphi 0, %s89
      %s111 = sphi 0, %s113
      %s114 = sphi 0, %s111
      %s115 = sphi 0, %s114
      %s131 = sphi 0, %s115
    $region4: #{tpu_custom_call.1} parent=1 // loop_header_branch
      %20 = sbr.rel (%p18) target = $region8
    $region5: #{tpu_custom_call.1} parent=1 // loop_body
      %s22 = ssub.s32 %s17, 1
      %s23 = ssub.s32 %s17, 2
      %s30 = sadd.s32 1, %s25
      %p31 = scmp.ge.s32.totalorder %s30, 1
      %s32 = scalar_select %p31, 0, %s30
      %s33 = sadd.s32 1, %s24
      %s34 = scalar_select %p31, %s33, %s24
      %p35 = scmp.ge.s32.totalorder %s34, 2
      %s36 = scalar_select %p35, 0, %s34
      %s37 = ssub.s32 %s24, %s36
      %s38 = ssub.s32 %s25, %s32
      %s39 = sor.u32 %s37, %s38
      %p40 = scmp.eq.s32.totalorder %s39, 0
      %s42 = sadd.s32 %s41, 1
      %s43 = scalar_select %p40, %s41, %s42
      %p46 = pneg %p40
      %p47 = scmp.eq.s32.totalorder %s17, 1
      %p48 = por %p46, %p47
      %p49 = scmp.ne.s32.totalorder %s41, %s44
      %p50 = scmp.eq.s32.totalorder %s17, 0
      %p51 = por %p49, %p50
      %p52 = scmp.ne.s32.totalorder %s41, %s44
      %p53 = scmp.eq.s32.totalorder %s22, 1
      %p54 = por %p52, %p53
      %p55 = scmp.ne.s32.totalorder %s44, %s45
      %p56 = scmp.eq.s32.totalorder %s22, 0
      %p57 = por %p55, %p56
      %p58 = scmp.ne.s32.totalorder %s44, %s45
      %p59 = scmp.eq.s32.totalorder %s23, 1
      %p60 = por %p58, %p59
      %p62 = scmp.ne.s32.totalorder %s45, %s61
      %p63 = scmp.eq.s32.totalorder %s23, 0
      %p64 = por %p62, %p63
      %s66 = sadd.s32 %s65, 1
      %p69 = scmp.eq.s32.totalorder %s17, 1
      %p70 = scmp.ne.s32.totalorder %s65, %s67
      %p71 = scmp.eq.s32.totalorder %s17, 0
      %p72 = por %p70, %p71
      %p73 = scmp.ne.s32.totalorder %s65, %s67
      %p74 = scmp.eq.s32.totalorder %s22, 1
      %p75 = por %p73, %p74
      %p76 = scmp.ne.s32.totalorder %s67, %s68
      %p77 = scmp.eq.s32.totalorder %s22, 0
      %p78 = por %p76, %p77
      %p79 = scmp.ne.s32.totalorder %s67, %s68
      %p80 = scmp.eq.s32.totalorder %s23, 1
      %p81 = por %p79, %p80
      %p83 = scmp.ne.s32.totalorder %s68, %s82
      %p84 = scmp.eq.s32.totalorder %s23, 0
      %p85 = por %p83, %p84
      %s87 = sadd.s32 %s86, 1
      %p90 = scmp.eq.s32.totalorder %s17, 1
      %p91 = scmp.ne.s32.totalorder %s86, %s88
      %p92 = scmp.eq.s32.totalorder %s17, 0
      %p93 = por %p91, %p92
      %p94 = scmp.ne.s32.totalorder %s86, %s88
      %p95 = scmp.eq.s32.totalorder %s22, 1
      %p96 = por %p94, %p95
      %p97 = scmp.ne.s32.totalorder %s88, %s89
      %p98 = scmp.eq.s32.totalorder %s22, 0
      %p99 = por %p97, %p98
      %p100 = scmp.ne.s32.totalorder %s88, %s89
      %p101 = scmp.eq.s32.totalorder %s23, 1
      %p102 = por %p100, %p101
      %p104 = scmp.ne.s32.totalorder %s89, %s103
      %p105 = scmp.eq.s32.totalorder %s23, 0
      %p106 = por %p104, %p105
      %s107 = ssub.s32 %s24, %s36
      %s108 = ssub.s32 %s25, %s32
      %s109 = sor.u32 %s107, %s108
      %p110 = scmp.eq.s32.totalorder %s109, 0
      %s112 = sadd.s32 %s111, 1
      %s113 = scalar_select %p110, %s111, %s112
      %p116 = pneg %p110
      %p117 = scmp.eq.s32.totalorder %s17, 1
      %p118 = por %p116, %p117
      %p119 = scmp.ne.s32.totalorder %s111, %s114
      %p120 = scmp.eq.s32.totalorder %s17, 0
      %p121 = por %p119, %p120
      %p122 = scmp.ne.s32.totalorder %s111, %s114
      %p123 = scmp.eq.s32.totalorder %s22, 1
      %p124 = por %p122, %p123
      %p125 = scmp.ne.s32.totalorder %s114, %s115
      %p126 = scmp.eq.s32.totalorder %s22, 0
      %p127 = por %p125, %p126
      %p128 = scmp.ne.s32.totalorder %s114, %s115
      %p129 = scmp.eq.s32.totalorder %s23, 1
      %p130 = por %p128, %p129
      %p132 = scmp.ne.s32.totalorder %s115, %s131
      %p133 = scmp.eq.s32.totalorder %s23, 0
      %p134 = por %p132, %p133
      %p135 = scmp.le.s32.totalorder 1, %s17
      %p136 = scmp.lt.s32.totalorder %s17, 3
      %p137 = pnand %p135, %p136
      %p138 = pneg %p137
      // Predicated region
      $region9: #{tpu_custom_call.1} parent=5 // pred_check
        _
      $region10: #{tpu_custom_call.1} parent=5 // pred_check_branch
        %140 = sbr.rel (%p137) target = $region12
      $region11: #{tpu_custom_call.1} parent=5 // pred_region
        %s141 = ssub.s32 %s17, 1
        // Predicated region
        $region13: #{tpu_custom_call.1} parent=11 // pred_check
          %p142 = pneg %p78
        $region14: #{tpu_custom_call.1} parent=11 // pred_check_branch
          %144 = sbr.rel (%p142) target = $region16
        $region15: #{tpu_custom_call.1} parent=11 // pred_region
          %146 = vsyncadd [#allocation5], 0
          %s148 = sshll.u32 %s1, 4
          %s149 = int_to_ptr.hbm [resolvable:$true] %s148
          %151 = dma.hbm_to_smem %s149, 16, [#allocation7], [#allocation5]
        $region16: #{tpu_custom_call.1} parent=11 // pred_fallthru
          _
        // Predicated region
        $region17: #{tpu_custom_call.1} parent=11 // pred_check
          %p152 = pneg %p99
        $region18: #{tpu_custom_call.1} parent=11 // pred_check_branch
          %154 = sbr.rel (%p152) target = $region20
        $region19: #{tpu_custom_call.1} parent=11 // pred_region
          %156 = vsyncadd [#allocation6], 0
          %s158 = sshll.u32 %s2, 4
          %s159 = int_to_ptr.vmem [resolvable:$true] %s158
          %161 = dma.vmem_to_smem %s159, 16, [#allocation8], [#allocation6]
        $region20: #{tpu_custom_call.1} parent=11 // pred_fallthru
          _
      $region12: #{tpu_custom_call.1} parent=5 // pred_fallthru
        _
      %p162 = scmp.lt.s32.totalorder %s17, 2
      // Predicated region
      $region21: #{tpu_custom_call.1} parent=5 // pred_check
        %p163 = pneg %p162
      $region22: #{tpu_custom_call.1} parent=5 // pred_check_branch
        %165 = sbr.rel (%p163) target = $region24
      $region23: #{tpu_custom_call.1} parent=5 // pred_region
        // Predicated region
        $region25: #{tpu_custom_call.1} parent=23 // pred_check
          %p166 = pneg %p51
        $region26: #{tpu_custom_call.1} parent=23 // pred_check_branch
          %168 = sbr.rel (%p166) target = $region28
        $region27: #{tpu_custom_call.1} parent=23 // pred_region
          %s169 = sand.u32 %s41, 1
          %s170 = scalar_lea.sflag [#allocation3], %s169
          %s171 = sand.u32 %s41, 1
          %s172 = smul.addr %s171, 8
          %s173 = scalar_lea.vmem [#allocation2], %s172
          %175 = vsyncadd %s170, 0
          %s176 = smul.addr %s24, 4
          %s177 = sadd.s32 %s25, %s176
          %s178 = smul.addr %s177, 2
          %s179 = scalar_lea.hbm %s0, %s178
          %s180 = sshll.u32 %s179, 4
          %s181 = int_to_ptr.hbm [resolvable:$true] %s180
          %s182 = sshll.u32 %s173, 4
          %s183 = int_to_ptr.vmem [resolvable:$true] %s182
          %188 = dma.hbm_to_vmem [thread:$0]  %s181, 128, %s183, %s170, 32, 32, 2
        $region28: #{tpu_custom_call.1} parent=23 // pred_fallthru
          _
      $region24: #{tpu_custom_call.1} parent=5 // pred_fallthru
        _
      %p189 = scmp.le.s32.totalorder 1, %s17
      %p190 = scmp.lt.s32.totalorder %s17, 3
      %p191 = pnand %p189, %p190
      %p192 = pneg %p191
      // Predicated region
      $region29: #{tpu_custom_call.1} parent=5 // pred_check
        _
      $region30: #{tpu_custom_call.1} parent=5 // pred_check_branch
        %194 = sbr.rel (%p191) target = $region32
      $region31: #{tpu_custom_call.1} parent=5 // pred_region
        %s195 = ssub.s32 %s17, 1
        %s196 = sand.u32 %s44, 1
        %s197 = scalar_lea.sflag [#allocation3], %s196
        %s198 = sand.u32 %s44, 1
        %s199 = smul.addr %s198, 8
        %s200 = scalar_lea.vmem [#allocation2], %s199
        // Predicated region
        $region33: #{tpu_custom_call.1} parent=31 // pred_check
          %p201 = pneg %p57
        $region34: #{tpu_custom_call.1} parent=31 // pred_check_branch
          %203 = sbr.rel (%p201) target = $region36
        $region35: #{tpu_custom_call.1} parent=31 // pred_region
          %205 = dma.done %s197, 128
        $region36: #{tpu_custom_call.1} parent=31 // pred_fallthru
          _
        // Predicated region
        $region37: #{tpu_custom_call.1} parent=31 // pred_check
          %p206 = pneg %p78
        $region38: #{tpu_custom_call.1} parent=31 // pred_check_branch
          %208 = sbr.rel (%p206) target = $region40
        $region39: #{tpu_custom_call.1} parent=31 // pred_region
          %210 = dma.done [#allocation5], 16
        $region40: #{tpu_custom_call.1} parent=31 // pred_fallthru
          _
        // Predicated region
        $region41: #{tpu_custom_call.1} parent=31 // pred_check
          %p211 = pneg %p99
        $region42: #{tpu_custom_call.1} parent=31 // pred_check_branch
          %213 = sbr.rel (%p211) target = $region44
        $region43: #{tpu_custom_call.1} parent=31 // pred_region
          %215 = dma.done [#allocation6], 16
        $region44: #{tpu_custom_call.1} parent=31 // pred_fallthru
          _
        %216 = sfence
        %s217 = sand.u32 %s44, 1
        %s218 = scalar_lea.sflag [#allocation3], %s217
        %s219 = sand.u32 %s44, 1
        %s220 = smul.addr %s219, 8
        %s221 = scalar_lea.vmem [#allocation2], %s220
        %p222 = pneg %p57
        %p223 = pneg %p54
        %p224 = pneg %p78
        %p225 = pneg %p75
        %p226 = pneg %p99
        %p227 = pneg %p96
        %p228 = pneg %p127
        %p229 = pneg %p124
        %s230 = sand.u32 %s114, 1
        %s231 = scalar_lea.sflag [#allocation4], %s230
        %s232 = sand.u32 %s114, 1
        %s233 = smul.addr %s232, 4
        %s234 = scalar_lea.vmem [#allocation9], %s233
        %v235 = vld [vmem:[%s200] sm:$0x3]
        %s236 = sld [smem:[#allocation7]]
        %v237 = vstv %s236
        %v238 = vmul.f32 %v235, %v237
        %s239 = scalar_lea.vmem %s200, 2 [#allocation2]
        %v240 = vld [vmem:[%s239] sm:$0x3]
        %s241 = sld [smem:[#allocation7 + $0x1]]
        %v242 = vstv %s241
        %v243 = vmul.f32 %v240, %v242
        %v244 = vadd.f32 %v238, %v243
        %s245 = scalar_lea.vmem %s200, 4 [#allocation2]
        %v246 = vld [vmem:[%s245] sm:$0x3]
        %s247 = sld [smem:[#allocation7 + $0x2]]
        %v248 = vstv %s247
        %v249 = vmul.f32 %v246, %v248
        %v250 = vadd.f32 %v244, %v249
        %s251 = scalar_lea.vmem %s200, 6 [#allocation2]
        %v252 = vld [vmem:[%s251] sm:$0x3]
        %s253 = sld [smem:[#allocation7 + $0x3]]
        %v254 = vstv %s253
        %v255 = vmul.f32 %v252, %v254
        %v256 = vadd.f32 %v250, %v255
        %s257 = sld [smem:[#allocation8]]
        %v258 = vstv %s257
        %v259 = vadd.f32 %v256, %v258
        %v260 = vxor.u32 %v259, 2147483648
        %v261 = vmul.f32 %v260, 1.442695
        %v262 = vpow.pop %v261
        %v263 = vadd.f32 %v262, 1.0
        %v264 = vrcp.pop %v263
        %v265 = vmul.f32 %v263, %v264
        %v266 = vsub.f32 1.0, %v265
        %v267 = vmul.f32 %v264, %v266
        %v268 = vadd.f32 %v264, %v267
        %vm269 = vweird.f32 %v263
        %vm270 = vweird.f32 %v264
        %vm271 = vmor %vm269, %vm270
        %v272 = vsel %vm271, %v264, %v268
        %v273 = vand.u32 2147483647, %v263
        %vm274 = vcmp.eq.f32.partialorder %v273, 8.507059e+37
        %v275 = vand.u32 %v263, 2147483648
        %v276 = vor.u32 1.1754944e-38, %v275
        %v277 = vsel %vm274, %v276, %v272
        %v278 = vmul.f32 1.0, %v277
        %279 = vst [vmem:[%s234] sm:$0x3] %v278
        %v280 = vld [vmem:[%s200] sm:$0x3]
        %s281 = sld [smem:[#allocation7 + $0x4]]
        %v282 = vstv %s281
        %v283 = vmul.f32 %v280, %v282
        %v284 = vld [vmem:[%s239] sm:$0x3]
        %s285 = sld [smem:[#allocation7 + $0x5]]
        %v286 = vstv %s285
        %v287 = vmul.f32 %v284, %v286
        %v288 = vadd.f32 %v283, %v287
        %v289 = vld [vmem:[%s245] sm:$0x3]
        %s290 = sld [smem:[#allocation7 + $0x6]]
        %v291 = vstv %s290
        %v292 = vmul.f32 %v289, %v291
        %v293 = vadd.f32 %v288, %v292
        %v294 = vld [vmem:[%s251] sm:$0x3]
        %s295 = sld [smem:[#allocation7 + $0x7]]
        %v296 = vstv %s295
        %v297 = vmul.f32 %v294, %v296
        %v298 = vadd.f32 %v293, %v297
        %s299 = sld [smem:[#allocation8 + $0x1]]
        %v300 = vstv %s299
        %v301 = vadd.f32 %v298, %v300
        %v302 = vxor.u32 %v301, 2147483648
        %v303 = vmul.f32 %v302, 1.442695
        %v304 = vpow.pop %v303
        %v305 = vadd.f32 %v304, 1.0
        %v306 = vrcp.pop %v305
        %v307 = vmul.f32 %v305, %v306
        %v308 = vsub.f32 1.0, %v307
        %v309 = vmul.f32 %v306, %v308
        %v310 = vadd.f32 %v306, %v309
        %vm311 = vweird.f32 %v305
        %vm312 = vweird.f32 %v306
        %vm313 = vmor %vm311, %vm312
        %v314 = vsel %vm313, %v306, %v310
        %v315 = vand.u32 2147483647, %v305
        %vm316 = vcmp.eq.f32.partialorder %v315, 8.507059e+37
        %v317 = vand.u32 %v305, 2147483648
        %v318 = vor.u32 1.1754944e-38, %v317
        %v319 = vsel %vm316, %v318, %v314
        %v320 = vmul.f32 1.0, %v319
        %s321 = scalar_lea.vmem %s234, 2 [#allocation9]
        %322 = vst [vmem:[%s321] sm:$0x3] %v320
        %s323 = sand.u32 %s114, 1
        %s324 = scalar_lea.sflag [#allocation4], %s323
        %s325 = sand.u32 %s114, 1
        %s326 = smul.addr %s325, 4
        %s327 = scalar_lea.vmem [#allocation9], %s326
        // Predicated region
        $region45: #{tpu_custom_call.1} parent=31 // pred_check
          %p328 = pneg %p124
        $region46: #{tpu_custom_call.1} parent=31 // pred_check_branch
          %330 = sbr.rel (%p328) target = $region48
        $region47: #{tpu_custom_call.1} parent=31 // pred_region
          %332 = vsyncadd %s324, 0
          %s333 = smul.addr %s26, 2
          %s334 = sadd.s32 %s27, %s333
          %s335 = smul.addr %s334, 2
          %s336 = scalar_lea.hbm %s3, %s335
          %s337 = sshll.u32 %s327, 4
          %s338 = int_to_ptr.vmem [resolvable:$true] %s337
          %s339 = sshll.u32 %s336, 4
          %s340 = int_to_ptr.hbm [resolvable:$true] %s339
          %345 = dma.vmem_to_hbm [thread:$0]  %s338, 64, %s340, %s324, 32, 32, 2
        $region48: #{tpu_custom_call.1} parent=31 // pred_fallthru
          _
      $region32: #{tpu_custom_call.1} parent=5 // pred_fallthru
        _
      %p346 = scmp.le.s32.totalorder 2, %s17
      // Predicated region
      $region49: #{tpu_custom_call.1} parent=5 // pred_check
        %p347 = pneg %p346
      $region50: #{tpu_custom_call.1} parent=5 // pred_check_branch
        %349 = sbr.rel (%p347) target = $region52
      $region51: #{tpu_custom_call.1} parent=5 // pred_region
        %s350 = ssub.s32 %s17, 2
        // Predicated region
        $region53: #{tpu_custom_call.1} parent=51 // pred_check
          %p351 = pneg %p130
        $region54: #{tpu_custom_call.1} parent=51 // pred_check_branch
          %353 = sbr.rel (%p351) target = $region56
        $region55: #{tpu_custom_call.1} parent=51 // pred_region
          %s354 = sand.u32 %s115, 1
          %s355 = scalar_lea.sflag [#allocation4], %s354
          %s356 = sand.u32 %s115, 1
          %s357 = smul.addr %s356, 4
          %s358 = scalar_lea.vmem [#allocation9], %s357
          %360 = dma.done %s355, 64
        $region56: #{tpu_custom_call.1} parent=51 // pred_fallthru
          _
      $region52: #{tpu_custom_call.1} parent=5 // pred_fallthru
        _
    $region6: #{tpu_custom_call.1} parent=1 // loop_footer
      %s21 = sadd.s32 1, %s17
    $region7: #{tpu_custom_call.1} parent=1 // loop_footer_branch
      %16 = sbr.rel target = $region3
    $region8: #{tpu_custom_call.1} parent=1 // loop_exit
      _
    %361 = vsyncpa [#allocation3], 1
    %s362 = scalar_lea.sflag [#allocation3], 1
    %363 = vsyncpa %s362, 1
    %364 = vsyncpa [#allocation4], 1
    %s365 = scalar_lea.sflag [#allocation4], 1
    %366 = vsyncpa %s365, 1
    %367 = vsyncpa [#allocation5], 1
    %s368 = scalar_lea.sflag [#allocation5], 1
    %369 = vsyncpa %s368, 1
    %370 = vsyncpa [#allocation6], 1
    %s371 = scalar_lea.sflag [#allocation6], 1
    %372 = vsyncpa %s371, 1

</llo_original>
